<compile_context>
chip_gen: v7x
topology: tpu7x:2x2x1
jax: 0.10.0
libtpu: 0.0.40
codegen_flags: <defaults>
</compile_context>

<pallas_src>
import jax
import jax.numpy as jnp
from jax.experimental import pallas as pl
from jax.experimental.pallas import tpu as pltpu

# ---------------------------------------------------------------------------
# Static module hyper-parameters (mirrors CGRNN_cell.__init__)
# ---------------------------------------------------------------------------
D_IN = 4          # input feature channels
NUM_UNITS = 32    # hidden units (num_units == c_out of both gates)
NUM_NODES = 16    # graph nodes (kept small; module default is 36)
SUPPORT_LEN = 1
ORDER = 3
BATCH = 2

C_IN = D_IN + NUM_UNITS                      # conv input channels before expansion
NUM_TERMS = ORDER * SUPPORT_LEN + 1          # include_self term + order*support terms
C_TOTAL = NUM_TERMS * C_IN                   # Conv2d 1x1 input channels
GATES = 2 * NUM_UNITS                        # update + candidate rows, fused


# ---------------------------------------------------------------------------
# Pallas kernel: single grid-less invocation, whole problem resident in VMEM
# ---------------------------------------------------------------------------
def _cgrnn_kernel(x_ref, h_ref, w_ref, pows_ref, out_ref, hx1_scr):
    # x_ref   : (D_IN, B*V)        batch folded into the lane dimension
    # h_ref   : (U, B*V)
    # w_ref   : (T*2U, C_IN + 1)   fused [update|candidate] weights per term,
    #                              per-term columns ordered [h-cols | x-cols],
    #                              last column = bias (term-0 rows only)
    # pows_ref: (ORDER, B*V, B*V)  kron(I_B, (adj^T)^k), k = 1..ORDER
    # out_ref : (U, B*V)
    # hx1_scr : (C_IN + 1, B*V)    staging scratch for [h | x | ones]
    u_units = out_ref.shape[0]
    bv = out_ref.shape[1]

    # In-kernel concat (no per-step HBM round-trip for concat([x, h])).
    # Layout [h | x | 1] keeps every store start sublane-(8)-aligned.
    hx1_scr[:u_units, :] = h_ref[...]
    hx1_scr[u_units:u_units + D_IN, :] = x_ref[...]
    hx1_scr[u_units + D_IN:, :] = jnp.ones((1, bv), jnp.float32)

    # ONE MXU dot for all diffusion terms x both gates; the ones row makes the
    # last weight column act as the bias (term-0 rows only), so the bias add
    # rides on the MXU for free.
    y = jnp.dot(w_ref[...], hx1_scr[...],
                preferred_element_type=jnp.float32)          # (T*2U, B*V)

    # Reassociated diffusion:  W_t (XH P_t) == (W_t XH) P_t,
    # P_t = kron(I_B, (adj^T)^t) applies per-batch blocks in one dot.
    acc = y[:GATES, :]
    for t in range(1, NUM_TERMS):
        acc = acc + jnp.dot(y[t * GATES:(t + 1) * GATES, :], pows_ref[t - 1],
                            preferred_element_type=jnp.float32)

    u = jax.nn.sigmoid(acc[:u_units, :])                     # update gate   (U, B*V)
    c = jnp.tanh(acc[u_units:, :])                           # candidate     (U, B*V)
    out_ref[...] = (u * h_ref[...] + (1.0 - u) * c).astype(out_ref.dtype)


# ---------------------------------------------------------------------------
# One-time preparation (hoisted out of the per-step path)
# ---------------------------------------------------------------------------
def prepare_gate_params(w_u, b_u, w_c, b_c):
    """Fuse both gates' Conv2d-1x1 weights + biases into one (T*2U, C_IN+1) array.

    Row blocks of 2U correspond to diffusion terms; within each block rows 0:U
    are the update gate and U:2U the candidate gate. Per-term columns are
    reordered to [h-channels | x-channels] to match the kernel scratch layout.
    The last column holds the bias (nonzero only in the term-0 rows)."""
    def split_terms(w):                                    # (U, C_TOTAL) -> (T, U, C_IN)
        return jnp.transpose(w.reshape(NUM_UNITS, NUM_TERMS, C_IN), (1, 0, 2))

    w_t = jnp.concatenate([split_terms(w_u), split_terms(w_c)], axis=1)   # (T, 2U, C_IN)
    # reorder per-term channels from [x | h] (torch concat order) to [h | x]
    w_t = jnp.concatenate([w_t[..., D_IN:], w_t[..., :D_IN]], axis=-1)
    w_stacked = w_t.reshape(NUM_TERMS * GATES, C_IN)                      # (T*2U, C_IN)

    bias = jnp.concatenate([b_u, b_c], axis=0)                            # (2U,)
    bias_col = jnp.zeros((NUM_TERMS * GATES, 1), jnp.float32).at[:GATES, 0].set(bias)
    return jnp.concatenate([w_stacked, bias_col], axis=1)                 # (T*2U, C_IN+1)


def prepare_adj_powers(adj, batch):
    """adj is fixed across time steps: precompute kron(I_B, (adj^T)^k), k=1..ORDER."""
    at = adj.T
    pows = [at]
    for _ in range(2, ORDER + 1):
        pows.append(pows[-1] @ at)
    eye = jnp.eye(batch, dtype=adj.dtype)
    return jnp.stack([jnp.kron(eye, p) for p in pows], axis=0)   # (ORDER, B*V, B*V)


# ---------------------------------------------------------------------------
# Per-step wrapper: mirrors CGRNN_cell.forward (step == 0 branch)
# ---------------------------------------------------------------------------
@jax.jit
def cgrnn_cell_forward(x, h, w_aug, adj_pows):
    """x: (B, d_in, V), h: (B, U, V); w_aug/adj_pows from prepare_* helpers.
    Returns the new hidden state, shape (B, U, V)."""
    B, d_in, V = x.shape
    U = h.shape[1]
    # Batch-folded, lane-dense layout (rows = features, lanes = B*V). In a real
    # recurrent loop these transposes are done once upstream and h stays folded.
    x_f = jnp.transpose(x, (1, 0, 2)).reshape(d_in, B * V)
    h_f = jnp.transpose(h, (1, 0, 2)).reshape(U, B * V)

    out_f = pl.pallas_call(
        _cgrnn_kernel,
        out_shape=jax.ShapeDtypeStruct((U, B * V), jnp.float32),
        in_specs=[pl.BlockSpec(memory_space=pltpu.MemorySpace.VMEM)] * 4,
        out_specs=pl.BlockSpec(memory_space=pltpu.MemorySpace.VMEM),
        scratch_shapes=[pltpu.VMEM((C_IN + 1, B * V), jnp.float32)],
    )(x_f, h_f, w_aug, adj_pows)

    return jnp.transpose(out_f.reshape(U, B, V), (1, 0, 2))     # back to (B, U, V)


# ---------------------------------------------------------------------------
# Pure-JAX reference (mirrors the torch forward exactly for step == 0)
# ---------------------------------------------------------------------------
def _reference(x, h, adj, w_u, b_u, w_c, b_c):
    xh = jnp.concatenate([x, h], axis=1)          # (B, C, V)
    feats = [xh]
    for _ in range(SUPPORT_LEN):
        xk = jnp.einsum('ncv,wv->ncw', xh, adj)
        feats.append(xk)
        for _ in range(2, ORDER + 1):
            xk = jnp.einsum('ncv,wv->ncw', xk, adj)
            feats.append(xk)
    feat = jnp.concatenate(feats, axis=1)         # (B, C_total, V)
    u = jax.nn.sigmoid(jnp.einsum('oc,bcv->bov', w_u, feat) + b_u[None, :, None])
    c = jnp.tanh(jnp.einsum('oc,bcv->bov', w_c, feat) + b_c[None, :, None])
    return u * h + (1.0 - u) * c


if __name__ == "__main__":
    key = jax.random.PRNGKey(0)
    k_x, k_h, k_a, k_wu, k_bu, k_wc, k_bc = jax.random.split(key, 7)

    x = jax.random.normal(k_x, (BATCH, D_IN, NUM_NODES), jnp.float32)
    h = jax.random.normal(k_h, (BATCH, NUM_UNITS, NUM_NODES), jnp.float32)
    adj = jax.random.uniform(k_a, (NUM_NODES, NUM_NODES), jnp.float32)

    # Deterministic parameter init (Conv2d 1x1 weights squeezed to 2-D).
    w_u = 0.05 * jax.random.normal(k_wu, (NUM_UNITS, C_TOTAL), jnp.float32)
    b_u = 0.05 * jax.random.normal(k_bu, (NUM_UNITS,), jnp.float32)
    w_c = 0.05 * jax.random.normal(k_wc, (NUM_UNITS, C_TOTAL), jnp.float32)
    b_c = 0.05 * jax.random.normal(k_bc, (NUM_UNITS,), jnp.float32)

    # One-time prep (reused across all time steps in a real model).
    w_aug = prepare_gate_params(w_u, b_u, w_c, b_c)
    adj_pows = prepare_adj_powers(adj, BATCH)

    out = cgrnn_cell_forward(x, h, w_aug, adj_pows)
    out = jax.block_until_ready(out)

    ref = _reference(x, h, adj, w_u, b_u, w_c, b_c)
    assert out.shape == (BATCH, NUM_UNITS, NUM_NODES)
    assert jnp.allclose(out, ref, rtol=1e-4, atol=1e-4), "mismatch vs reference"
    print("KERNEL_OK")
</pallas_src>

<mosaic_0001>
module attributes {stable_mosaic.version = 11 : i64} {
  func.func @_cgrnn_kernel(%arg0: memref<4x32xf32, #tpu.memory_space<vmem>>, %arg1: memref<32x32xf32, #tpu.memory_space<vmem>>, %arg2: memref<256x37xf32, #tpu.memory_space<vmem>>, %arg3: memref<3x32x32xf32, #tpu.memory_space<vmem>>, %arg4: memref<32x32xf32, #tpu.memory_space<vmem>>, %arg5: memref<37x32xf32, #tpu.memory_space<vmem>>) attributes {dimension_semantics = [], scalar_prefetch = 0 : i64, scratch_operands = 1 : i64, tpu.core_type = #tpu.core_type<tc>} {
    %c0 = arith.constant 0 : index
    %c0_0 = arith.constant 0 : index
    %0 = vector.load %arg1[%c0, %c0_0] : memref<32x32xf32, #tpu.memory_space<vmem>>, vector<32x32xf32>
    %c0_1 = arith.constant 0 : index
    %c0_2 = arith.constant 0 : index
    %1 = vector.load %arg5[%c0_1, %c0_2] : memref<37x32xf32, #tpu.memory_space<vmem>>, vector<32x32xf32>
    tpu.vector_store %arg5[%c0_1, %c0_2], %0 {strides = array<i32>} : memref<37x32xf32, #tpu.memory_space<vmem>>, vector<32x32xf32>,
    %c0_3 = arith.constant 0 : index
    %c0_4 = arith.constant 0 : index
    %2 = vector.load %arg0[%c0_3, %c0_4] : memref<4x32xf32, #tpu.memory_space<vmem>>, vector<4x32xf32>
    %c32 = arith.constant 32 : index
    %c0_5 = arith.constant 0 : index
    %3 = vector.load %arg5[%c32, %c0_5] : memref<37x32xf32, #tpu.memory_space<vmem>>, vector<4x32xf32>
    tpu.vector_store %arg5[%c32, %c0_5], %2 {strides = array<i32>} : memref<37x32xf32, #tpu.memory_space<vmem>>, vector<4x32xf32>,
    %cst = arith.constant 1.000000e+00 : f32
    %4 = vector.broadcast %cst : f32 to vector<1x32xf32>
    %c36 = arith.constant 36 : index
    %c0_6 = arith.constant 0 : index
    %5 = vector.load %arg5[%c36, %c0_6] : memref<37x32xf32, #tpu.memory_space<vmem>>, vector<1x32xf32>
    tpu.vector_store %arg5[%c36, %c0_6], %4 {strides = array<i32>} : memref<37x32xf32, #tpu.memory_space<vmem>>, vector<1x32xf32>,
    %c0_7 = arith.constant 0 : index
    %c0_8 = arith.constant 0 : index
    %6 = vector.load %arg2[%c0_7, %c0_8] : memref<256x37xf32, #tpu.memory_space<vmem>>, vector<256x37xf32>
    %c0_9 = arith.constant 0 : index
    %c0_10 = arith.constant 0 : index
    %7 = vector.load %arg5[%c0_9, %c0_10] : memref<37x32xf32, #tpu.memory_space<vmem>>, vector<37x32xf32>
    %cst_11 = arith.constant dense<0.000000e+00> : vector<256x32xf32>
    %8 = tpu.matmul %6, %7, %cst_11 {dimension_numbers = #tpu.dot_dimension_numbers<[1], [0], [0], [1], [0, 0, 1, 1], [], []>} : vector<256x37xf32>, vector<37x32xf32>, vector<256x32xf32> -> vector<256x32xf32>
    %9 = vector.extract_strided_slice %8 {offsets = [0, 0], sizes = [64, 32], strides = [1, 1]} : vector<256x32xf32> to vector<64x32xf32>
    %10 = vector.extract_strided_slice %8 {offsets = [64, 0], sizes = [64, 32], strides = [1, 1]} : vector<256x32xf32> to vector<64x32xf32>
    %c0_12 = arith.constant 0 : index
    %c0_13 = arith.constant 0 : index
    %c0_14 = arith.constant 0 : index
    %11 = vector.load %arg3[%c0_12, %c0_13, %c0_14] : memref<3x32x32xf32, #tpu.memory_space<vmem>>, vector<1x32x32xf32>
    %12 = vector.shape_cast %11 : vector<1x32x32xf32> to vector<32x32xf32>
    %cst_15 = arith.constant dense<0.000000e+00> : vector<64x32xf32>
    %13 = tpu.matmul %10, %12, %cst_15 {dimension_numbers = #tpu.dot_dimension_numbers<[1], [0], [0], [1], [0, 0, 1, 1], [], []>} : vector<64x32xf32>, vector<32x32xf32>, vector<64x32xf32> -> vector<64x32xf32>
    %14 = arith.addf %9, %13 : vector<64x32xf32>
    %15 = vector.extract_strided_slice %8 {offsets = [128, 0], sizes = [64, 32], strides = [1, 1]} : vector<256x32xf32> to vector<64x32xf32>
    %c1 = arith.constant 1 : index
    %c0_16 = arith.constant 0 : index
    %c0_17 = arith.constant 0 : index
    %16 = vector.load %arg3[%c1, %c0_16, %c0_17] : memref<3x32x32xf32, #tpu.memory_space<vmem>>, vector<1x32x32xf32>
    %17 = vector.shape_cast %16 : vector<1x32x32xf32> to vector<32x32xf32>
    %cst_18 = arith.constant dense<0.000000e+00> : vector<64x32xf32>
    %18 = tpu.matmul %15, %17, %cst_18 {dimension_numbers = #tpu.dot_dimension_numbers<[1], [0], [0], [1], [0, 0, 1, 1], [], []>} : vector<64x32xf32>, vector<32x32xf32>, vector<64x32xf32> -> vector<64x32xf32>
    %19 = arith.addf %14, %18 : vector<64x32xf32>
    %20 = vector.extract_strided_slice %8 {offsets = [192, 0], sizes = [64, 32], strides = [1, 1]} : vector<256x32xf32> to vector<64x32xf32>
    %c2 = arith.constant 2 : index
    %c0_19 = arith.constant 0 : index
    %c0_20 = arith.constant 0 : index
    %21 = vector.load %arg3[%c2, %c0_19, %c0_20] : memref<3x32x32xf32, #tpu.memory_space<vmem>>, vector<1x32x32xf32>
    %22 = vector.shape_cast %21 : vector<1x32x32xf32> to vector<32x32xf32>
    %cst_21 = arith.constant dense<0.000000e+00> : vector<64x32xf32>
    %23 = tpu.matmul %20, %22, %cst_21 {dimension_numbers = #tpu.dot_dimension_numbers<[1], [0], [0], [1], [0, 0, 1, 1], [], []>} : vector<64x32xf32>, vector<32x32xf32>, vector<64x32xf32> -> vector<64x32xf32>
    %24 = arith.addf %19, %23 : vector<64x32xf32>
    %25 = vector.extract_strided_slice %24 {offsets = [0, 0], sizes = [32, 32], strides = [1, 1]} : vector<64x32xf32> to vector<32x32xf32>
    %26 = arith.negf %25 : vector<32x32xf32>
    %27 = math.exp %26 : vector<32x32xf32>
    %cst_22 = arith.constant 1.000000e+00 : f32
    %28 = vector.broadcast %cst_22 : f32 to vector<32x32xf32>
    %29 = arith.addf %28, %27 : vector<32x32xf32>
    %30 = arith.divf %28, %29 : vector<32x32xf32>
    %31 = vector.extract_strided_slice %24 {offsets = [32, 0], sizes = [32, 32], strides = [1, 1]} : vector<64x32xf32> to vector<32x32xf32>
    %32 = math.tanh %31 : vector<32x32xf32>
    %c0_23 = arith.constant 0 : index
    %c0_24 = arith.constant 0 : index
    %33 = vector.load %arg1[%c0_23, %c0_24] : memref<32x32xf32, #tpu.memory_space<vmem>>, vector<32x32xf32>
    %34 = arith.mulf %30, %33 : vector<32x32xf32>
    %cst_25 = arith.constant 1.000000e+00 : f32
    %35 = vector.broadcast %cst_25 : f32 to vector<32x32xf32>
    %36 = arith.subf %35, %30 : vector<32x32xf32>
    %37 = arith.mulf %36, %32 : vector<32x32xf32>
    %38 = arith.addf %34, %37 : vector<32x32xf32>
    %c0_26 = arith.constant 0 : index
    %c0_27 = arith.constant 0 : index
    %39 = vector.load %arg4[%c0_26, %c0_27] : memref<32x32xf32, #tpu.memory_space<vmem>>, vector<32x32xf32>
    tpu.vector_store %arg4[%c0_26, %c0_27], %38 {strides = array<i32>} : memref<32x32xf32, #tpu.memory_space<vmem>>, vector<32x32xf32>,
    return
  }
}

</mosaic_0001>

<llo_original>
// kernel: cgrnn_cell_forward.1
$region0: #{cgrnn_cell_forward.1}
  #allocation0 [shape = 'u32[]', space=smem, size = 0x4, offset = 0x4, fixed_abs, tag = 'smem constant byte address 0x4 - core index']
  #allocation1 [shape = 'u32[144,128]{1,0:T(1,128)}', space=vmem, size = 0x12000, scoped, tag = 'internal scratch']
  #allocation2 [shape = 'f32[37,32]{1,0:T(8,128)}', space=vmem, size = 0x5000, scoped, tag = 'scratch operand']
  %s0 = inlined_call_operand.vmem [shape: f32[4,32], index: 0, kind: input, shape index: {}]
  %s1 = inlined_call_operand.vmem [shape: f32[32,32], index: 1, kind: input, shape index: {}]
  %s2 = inlined_call_operand.vmem [shape: f32[256,37], index: 2, kind: input, shape index: {}]
  %s3 = inlined_call_operand.vmem [shape: f32[3,32,32], index: 3, kind: input, shape index: {}]
  %s4 = inlined_call_operand.vmem [shape: f32[32,32], index: 4, kind: output, shape index: {}]
  %s5 = sld [smem:[#allocation0]]
  $region26: #{cgrnn_cell_forward.1} parent=0
    _
  %s7 = ssub.s32 1, %s5
  %s8 = scalar_select 0, %s7, %s5
  // Predicated region
  $region2: #{cgrnn_cell_forward.1} parent=0 // pred_check
    _
  $region3: #{cgrnn_cell_forward.1} parent=0 // pred_check_branch
    %10 = sbr.rel (0) target = $region5
  $region4: #{cgrnn_cell_forward.1} parent=0 // pred_region
    _
  $region5: #{cgrnn_cell_forward.1} parent=0 // pred_fallthru
    _
  // Predicated region
  $region6: #{cgrnn_cell_forward.1} parent=0 // pred_check
    _
  $region7: #{cgrnn_cell_forward.1} parent=0 // pred_check_branch
    %12 = sbr.rel (0) target = $region9
  $region8: #{cgrnn_cell_forward.1} parent=0 // pred_region
    _
  $region9: #{cgrnn_cell_forward.1} parent=0 // pred_fallthru
    _
  // Predicated region
  $region10: #{cgrnn_cell_forward.1} parent=0 // pred_check
    _
  $region11: #{cgrnn_cell_forward.1} parent=0 // pred_check_branch
    %14 = sbr.rel (0) target = $region13
  $region12: #{cgrnn_cell_forward.1} parent=0 // pred_region
    _
  $region13: #{cgrnn_cell_forward.1} parent=0 // pred_fallthru
    _
  // Predicated region
  $region14: #{cgrnn_cell_forward.1} parent=0 // pred_check
    _
  $region15: #{cgrnn_cell_forward.1} parent=0 // pred_check_branch
    %16 = sbr.rel (0) target = $region17
  $region16: #{cgrnn_cell_forward.1} parent=0 // pred_region
    _
  $region17: #{cgrnn_cell_forward.1} parent=0 // pred_fallthru
    _
  %v17 = vld [vmem:[%s1] sm:$0xff]
  %v18 = vld [vmem:[%s1 + $0x8] sm:$0xff]
  %v19 = vld [vmem:[%s1 + $0x10] sm:$0xff]
  %v20 = vld [vmem:[%s1 + $0x18] sm:$0xff]
  %vm21 = vcmask 261120
  %22 = vst.msk [vmem:[#allocation2] sm:$0xff] %vm21, %v17
  %23 = vst.msk [vmem:[#allocation2 + $0x8] sm:$0xff] %vm21, %v18
  %24 = vst.msk [vmem:[#allocation2 + $0x10] sm:$0xff] %vm21, %v19
  %25 = vst.msk [vmem:[#allocation2 + $0x18] sm:$0xff] %vm21, %v20
  %v26 = vld [vmem:[%s0] sm:$0xf]
  %vm27 = vcmask 257024
  %28 = vst.msk [vmem:[#allocation2 + $0x20] sm:$0xf] %vm27, %v26
  %vm29 = vcmask 253952
  %30 = vst.msk [vmem:[#allocation2 + $0x24] sm:$0x1] %vm29, 1.0
  %v31 = vld [vmem:[%s2] sm:$0xff]
  %v32 = vld [vmem:[%s2 + $0x8] sm:$0xff]
  %v33 = vld [vmem:[%s2 + $0x10] sm:$0xff]
  %v34 = vld [vmem:[%s2 + $0x18] sm:$0xff]
  %v35 = vld [vmem:[%s2 + $0x20] sm:$0xff]
  %v36 = vld [vmem:[%s2 + $0x28] sm:$0xff]
  %v37 = vld [vmem:[%s2 + $0x30] sm:$0xff]
  %v38 = vld [vmem:[%s2 + $0x38] sm:$0xff]
  %v39 = vld [vmem:[%s2 + $0x40] sm:$0xff]
  %v40 = vld [vmem:[%s2 + $0x48] sm:$0xff]
  %v41 = vld [vmem:[%s2 + $0x50] sm:$0xff]
  %v42 = vld [vmem:[%s2 + $0x58] sm:$0xff]
  %v43 = vld [vmem:[%s2 + $0x60] sm:$0xff]
  %v44 = vld [vmem:[%s2 + $0x68] sm:$0xff]
  %v45 = vld [vmem:[%s2 + $0x70] sm:$0xff]
  %v46 = vld [vmem:[%s2 + $0x78] sm:$0xff]
  %v47 = vld [vmem:[%s2 + $0x80] sm:$0xff]
  %v48 = vld [vmem:[%s2 + $0x88] sm:$0xff]
  %v49 = vld [vmem:[%s2 + $0x90] sm:$0xff]
  %v50 = vld [vmem:[%s2 + $0x98] sm:$0xff]
  %v51 = vld [vmem:[%s2 + $0xa0] sm:$0xff]
  %v52 = vld [vmem:[%s2 + $0xa8] sm:$0xff]
  %v53 = vld [vmem:[%s2 + $0xb0] sm:$0xff]
  %v54 = vld [vmem:[%s2 + $0xb8] sm:$0xff]
  %v55 = vld [vmem:[%s2 + $0xc0] sm:$0xff]
  %v56 = vld [vmem:[%s2 + $0xc8] sm:$0xff]
  %v57 = vld [vmem:[%s2 + $0xd0] sm:$0xff]
  %v58 = vld [vmem:[%s2 + $0xd8] sm:$0xff]
  %v59 = vld [vmem:[%s2 + $0xe0] sm:$0xff]
  %v60 = vld [vmem:[%s2 + $0xe8] sm:$0xff]
  %v61 = vld [vmem:[%s2 + $0xf0] sm:$0xff]
  %v62 = vld [vmem:[%s2 + $0xf8] sm:$0xff]
  %v63 = vld [vmem:[#allocation2] sm:$0xff]
  %v64 = vld [vmem:[#allocation2 + $0x8] sm:$0xff]
  %v65 = vld [vmem:[#allocation2 + $0x10] sm:$0xff]
  %v66 = vld [vmem:[#allocation2 + $0x18] sm:$0xff]
  %v67 = vld [vmem:[#allocation2 + $0x20] sm:$0x1f]
  %vm68 = vcmask 302080
  %v70 = vsel %vm68, %v31, 0
  %v73 = vsel %vm68, %v32, 0
  %v76 = vsel %vm68, %v33, 0
  %v79 = vsel %vm68, %v34, 0
  %v82 = vsel %vm68, %v35, 0
  %v85 = vsel %vm68, %v36, 0
  %v88 = vsel %vm68, %v37, 0
  %v91 = vsel %vm68, %v38, 0
  %v94 = vsel %vm68, %v39, 0
  %v97 = vsel %vm68, %v40, 0
  %v100 = vsel %vm68, %v41, 0
  %v103 = vsel %vm68, %v42, 0
  %v106 = vsel %vm68, %v43, 0
  %v109 = vsel %vm68, %v44, 0
  %v112 = vsel %vm68, %v45, 0
  %v115 = vsel %vm68, %v46, 0
  %v118 = vsel %vm68, %v47, 0
  %v121 = vsel %vm68, %v48, 0
  %v124 = vsel %vm68, %v49, 0
  %v127 = vsel %vm68, %v50, 0
  %v130 = vsel %vm68, %v51, 0
  %v133 = vsel %vm68, %v52, 0
  %v136 = vsel %vm68, %v53, 0
  %v139 = vsel %vm68, %v54, 0
  %v142 = vsel %vm68, %v55, 0
  %v145 = vsel %vm68, %v56, 0
  %v148 = vsel %vm68, %v57, 0
  %v151 = vsel %vm68, %v58, 0
  %v154 = vsel %vm68, %v59, 0
  %v157 = vsel %vm68, %v60, 0
  %v160 = vsel %vm68, %v61, 0
  %v163 = vsel %vm68, %v62, 0
  %vm165 = vcmask 1044480
  %v167 = vsel %vm165, %v67, 0
  %169 = vmatprep.subr.mxu0 0.0
  %170 = vmatpush1.msra.mxu0 %v63
  %171 = vmatprep.subr.mxu0 0.0
  %172 = vmatpush1.msra.mxu0 %v64
  %173 = vmatprep.subr.mxu0 0.0
  %174 = vmatpush1.msra.mxu0 %v65
  %175 = vmatprep.subr.mxu0 0.0
  %176 = vmatpush1.msra.mxu0 %v66
  %177 = vmatprep.subr.mxu0 0.0
  %178 = vmatpush1.msra.mxu0 %v167
  %179 = vmatprep.subr.mxu0 0.0
  %180 = vmatpush1.msra.mxu0 0.0
  %181 = vmatprep.subr.mxu0 0.0
  %182 = vmatpush1.msra.mxu0 0.0
  %183 = vmatprep.subr.mxu0 0.0
  %184 = vmatpush1.msra.mxu0 0.0
  %185 = vmatprep.subr.mxu0 0.0
  %186 = vmatpush1.msra.mxu0 0.0
  %187 = vmatprep.subr.mxu0 0.0
  %188 = vmatpush1.msra.mxu0 0.0
  %189 = vmatprep.subr.mxu0 0.0
  %190 = vmatpush1.msra.mxu0 0.0
  %191 = vmatprep.subr.mxu0 0.0
  %192 = vmatpush1.msra.mxu0 0.0
  %193 = vmatprep.subr.mxu0 0.0
  %194 = vmatpush1.msra.mxu0 0.0
  %195 = vmatprep.subr.mxu0 0.0
  %196 = vmatpush1.msra.mxu0 0.0
  %197 = vmatprep.subr.mxu0 0.0
  %198 = vmatpush1.msra.mxu0 0.0
  %199 = vmatprep.subr.mxu0 0.0
  %200 = vmatpush1.msra.mxu0 0.0
  %201 = vmatprep.subr.mxu0 0.0
  %202 = vmatpush1.msra.mxu0 0.0
  %203 = vmatprep.subr.mxu0 0.0
  %204 = vmatpush1.msra.mxu0 0.0
  %205 = vmatprep.subr.mxu0 0.0
  %206 = vmatpush1.msra.mxu0 0.0
  %207 = vmatprep.subr.mxu0 0.0
  %208 = vmatpush1.msra.mxu0 0.0
  %209 = vmatprep.subr.mxu0 0.0
  %210 = vmatpush1.msra.mxu0 0.0
  %211 = vmatprep.subr.mxu0 0.0
  %212 = vmatpush1.msra.mxu0 0.0
  %213 = vmatprep.subr.mxu0 0.0
  %214 = vmatpush1.msra.mxu0 0.0
  %215 = vmatprep.subr.mxu0 0.0
  %216 = vmatpush1.msra.mxu0 0.0
  %217 = vmatprep.subr.mxu0 0.0
  %218 = vmatpush1.msra.mxu0 0.0
  %219 = vmatprep.subr.mxu0 0.0
  %220 = vmatpush1.msra.mxu0 0.0
  %221 = vmatprep.subr.mxu0 0.0
  %222 = vmatpush1.msra.mxu0 0.0
  %223 = vmatprep.subr.mxu0 0.0
  %224 = vmatpush1.msra.mxu0 0.0
  %225 = vmatprep.subr.mxu0 0.0
  %226 = vmatpush1.msra.mxu0 0.0
  %227 = vmatprep.subr.mxu0 0.0
  %228 = vmatpush1.msra.mxu0 0.0
  %229 = vmatprep.subr.mxu0 0.0
  %230 = vmatpush1.msra.mxu0 0.0
  %231 = vmatprep.subr.mxu0 0.0
  %232 = vmatpush1.msra.mxu0 0.0
  %233 = vmatprep.mubr.f32.mxu0 0.0
  %234 = vmatmul.mubr.f32.gmra.mrb[0].mxu0 %v70
  %v235 = vpop.f32.mrb[0].mxu0
  %v236 = vadd.f32 0.0, %v235
  %v237 = vpop.f32.mrb[0].mxu0
  %238 = vmatprep.mubr.f32.mxu0 0.0
  %239 = vmatmul.mubr.f32.gmra.mrb[0].mxu0 %v73
  %v240 = vpop.f32.mrb[0].mxu0
  %v241 = vadd.f32 0.0, %v240
  %v242 = vpop.f32.mrb[0].mxu0
  %243 = vmatprep.mubr.f32.mxu0 0.0
  %244 = vmatmul.mubr.f32.gmra.mrb[0].mxu0 %v76
  %v245 = vpop.f32.mrb[0].mxu0
  %v246 = vadd.f32 0.0, %v245
  %v247 = vpop.f32.mrb[0].mxu0
  %248 = vmatprep.mubr.f32.mxu0 0.0
  %249 = vmatmul.mubr.f32.gmra.mrb[0].mxu0 %v79
  %v250 = vpop.f32.mrb[0].mxu0
  %v251 = vadd.f32 0.0, %v250
  %v252 = vpop.f32.mrb[0].mxu0
  %253 = vmatprep.mubr.f32.mxu0 0.0
  %254 = vmatmul.mubr.f32.gmra.mrb[0].mxu0 %v82
  %v255 = vpop.f32.mrb[0].mxu0
  %v256 = vadd.f32 0.0, %v255
  %v257 = vpop.f32.mrb[0].mxu0
  %258 = vmatprep.mubr.f32.mxu0 0.0
  %259 = vmatmul.mubr.f32.gmra.mrb[0].mxu0 %v85
  %v260 = vpop.f32.mrb[0].mxu0
  %v261 = vadd.f32 0.0, %v260
  %v262 = vpop.f32.mrb[0].mxu0
  %263 = vmatprep.mubr.f32.mxu0 0.0
  %264 = vmatmul.mubr.f32.gmra.mrb[0].mxu0 %v88
  %v265 = vpop.f32.mrb[0].mxu0
  %v266 = vadd.f32 0.0, %v265
  %v267 = vpop.f32.mrb[0].mxu0
  %268 = vmatprep.mubr.f32.mxu0 0.0
  %269 = vmatmul.mubr.f32.gmra.mrb[0].mxu0 %v91
  %v270 = vpop.f32.mrb[0].mxu0
  %v271 = vadd.f32 0.0, %v270
  %v272 = vpop.f32.mrb[0].mxu0
  %273 = vmatprep.mubr.f32.mxu0 0.0
  %274 = vmatmul.mubr.f32.gmra.mrb[0].mxu0 %v94
  %v275 = vpop.f32.mrb[0].mxu0
  %v276 = vadd.f32 0.0, %v275
  %v277 = vpop.f32.mrb[0].mxu0
  %278 = vmatprep.mubr.f32.mxu0 0.0
  %279 = vmatmul.mubr.f32.gmra.mrb[0].mxu0 %v97
  %v280 = vpop.f32.mrb[0].mxu0
  %v281 = vadd.f32 0.0, %v280
  %v282 = vpop.f32.mrb[0].mxu0
  %283 = vmatprep.mubr.f32.mxu0 0.0
  %284 = vmatmul.mubr.f32.gmra.mrb[0].mxu0 %v100
  %v285 = vpop.f32.mrb[0].mxu0
  %v286 = vadd.f32 0.0, %v285
  %v287 = vpop.f32.mrb[0].mxu0
  %288 = vmatprep.mubr.f32.mxu0 0.0
  %289 = vmatmul.mubr.f32.gmra.mrb[0].mxu0 %v103
  %v290 = vpop.f32.mrb[0].mxu0
  %v291 = vadd.f32 0.0, %v290
  %v292 = vpop.f32.mrb[0].mxu0
  %293 = vmatprep.mubr.f32.mxu0 0.0
  %294 = vmatmul.mubr.f32.gmra.mrb[0].mxu0 %v106
  %v295 = vpop.f32.mrb[0].mxu0
  %v296 = vadd.f32 0.0, %v295
  %v297 = vpop.f32.mrb[0].mxu0
  %298 = vmatprep.mubr.f32.mxu0 0.0
  %299 = vmatmul.mubr.f32.gmra.mrb[0].mxu0 %v109
  %v300 = vpop.f32.mrb[0].mxu0
  %v301 = vadd.f32 0.0, %v300
  %v302 = vpop.f32.mrb[0].mxu0
  %303 = vmatprep.mubr.f32.mxu0 0.0
  %304 = vmatmul.mubr.f32.gmra.mrb[0].mxu0 %v112
  %v305 = vpop.f32.mrb[0].mxu0
  %v306 = vadd.f32 0.0, %v305
  %v307 = vpop.f32.mrb[0].mxu0
  %308 = vmatprep.mubr.f32.mxu0 0.0
  %309 = vmatmul.mubr.f32.gmra.mrb[0].mxu0 %v115
  %v310 = vpop.f32.mrb[0].mxu0
  %v311 = vadd.f32 0.0, %v310
  %v312 = vpop.f32.mrb[0].mxu0
  %313 = vmatprep.mubr.f32.mxu0 0.0
  %314 = vmatmul.mubr.f32.gmra.mrb[0].mxu0 %v118
  %v315 = vpop.f32.mrb[0].mxu0
  %v316 = vadd.f32 0.0, %v315
  %v317 = vpop.f32.mrb[0].mxu0
  %318 = vmatprep.mubr.f32.mxu0 0.0
  %319 = vmatmul.mubr.f32.gmra.mrb[0].mxu0 %v121
  %v320 = vpop.f32.mrb[0].mxu0
  %v321 = vadd.f32 0.0, %v320
  %v322 = vpop.f32.mrb[0].mxu0
  %323 = vmatprep.mubr.f32.mxu0 0.0
  %324 = vmatmul.mubr.f32.gmra.mrb[0].mxu0 %v124
  %v325 = vpop.f32.mrb[0].mxu0
  %v326 = vadd.f32 0.0, %v325
  %v327 = vpop.f32.mrb[0].mxu0
  %328 = vmatprep.mubr.f32.mxu0 0.0
  %329 = vmatmul.mubr.f32.gmra.mrb[0].mxu0 %v127
  %v330 = vpop.f32.mrb[0].mxu0
  %v331 = vadd.f32 0.0, %v330
  %v332 = vpop.f32.mrb[0].mxu0
  %333 = vmatprep.mubr.f32.mxu0 0.0
  %334 = vmatmul.mubr.f32.gmra.mrb[0].mxu0 %v130
  %v335 = vpop.f32.mrb[0].mxu0
  %v336 = vadd.f32 0.0, %v335
  %v337 = vpop.f32.mrb[0].mxu0
  %338 = vmatprep.mubr.f32.mxu0 0.0
  %339 = vmatmul.mubr.f32.gmra.mrb[0].mxu0 %v133
  %v340 = vpop.f32.mrb[0].mxu0
  %v341 = vadd.f32 0.0, %v340
  %v342 = vpop.f32.mrb[0].mxu0
  %343 = vmatprep.mubr.f32.mxu0 0.0
  %344 = vmatmul.mubr.f32.gmra.mrb[0].mxu0 %v136
  %v345 = vpop.f32.mrb[0].mxu0
  %v346 = vadd.f32 0.0, %v345
  %v347 = vpop.f32.mrb[0].mxu0
  %348 = vmatprep.mubr.f32.mxu0 0.0
  %349 = vmatmul.mubr.f32.gmra.mrb[0].mxu0 %v139
  %v350 = vpop.f32.mrb[0].mxu0
  %v351 = vadd.f32 0.0, %v350
  %v352 = vpop.f32.mrb[0].mxu0
  %353 = vmatprep.mubr.f32.mxu0 0.0
  %354 = vmatmul.mubr.f32.gmra.mrb[0].mxu0 %v142
  %v355 = vpop.f32.mrb[0].mxu0
  %v356 = vadd.f32 0.0, %v355
  %v357 = vpop.f32.mrb[0].mxu0
  %358 = vmatprep.mubr.f32.mxu0 0.0
  %359 = vmatmul.mubr.f32.gmra.mrb[0].mxu0 %v145
  %v360 = vpop.f32.mrb[0].mxu0
  %v361 = vadd.f32 0.0, %v360
  %v362 = vpop.f32.mrb[0].mxu0
  %363 = vmatprep.mubr.f32.mxu0 0.0
  %364 = vmatmul.mubr.f32.gmra.mrb[0].mxu0 %v148
  %v365 = vpop.f32.mrb[0].mxu0
  %v366 = vadd.f32 0.0, %v365
  %v367 = vpop.f32.mrb[0].mxu0
  %368 = vmatprep.mubr.f32.mxu0 0.0
  %369 = vmatmul.mubr.f32.gmra.mrb[0].mxu0 %v151
  %v370 = vpop.f32.mrb[0].mxu0
  %v371 = vadd.f32 0.0, %v370
  %v372 = vpop.f32.mrb[0].mxu0
  %373 = vmatprep.mubr.f32.mxu0 0.0
  %374 = vmatmul.mubr.f32.gmra.mrb[0].mxu0 %v154
  %v375 = vpop.f32.mrb[0].mxu0
  %v376 = vadd.f32 0.0, %v375
  %v377 = vpop.f32.mrb[0].mxu0
  %378 = vmatprep.mubr.f32.mxu0 0.0
  %379 = vmatmul.mubr.f32.gmra.mrb[0].mxu0 %v157
  %v380 = vpop.f32.mrb[0].mxu0
  %v381 = vadd.f32 0.0, %v380
  %v382 = vpop.f32.mrb[0].mxu0
  %383 = vmatprep.mubr.f32.mxu0 0.0
  %384 = vmatmul.mubr.f32.gmra.mrb[0].mxu0 %v160
  %v385 = vpop.f32.mrb[0].mxu0
  %v386 = vadd.f32 0.0, %v385
  %v387 = vpop.f32.mrb[0].mxu0
  %388 = vmatprep.mubr.f32.mxu0 0.0
  %389 = vmatmul.mubr.f32.gmra.mrb[0].mxu0 %v163
  %v390 = vpop.f32.mrb[0].mxu0
  %v391 = vadd.f32 0.0, %v390
  %v392 = vpop.f32.mrb[0].mxu0
  %393 = vdwg.mxu0
  %v394 = vld [vmem:[%s3] sm:$0xff]
  %v395 = vld [vmem:[%s3 + $0x8] sm:$0xff]
  %v396 = vld [vmem:[%s3 + $0x10] sm:$0xff]
  %v397 = vld [vmem:[%s3 + $0x18] sm:$0xff]
  %v399 = vsel %vm21, %v276, 0
  %v402 = vsel %vm21, %v281, 0
  %v405 = vsel %vm21, %v286, 0
  %v408 = vsel %vm21, %v291, 0
  %v411 = vsel %vm21, %v296, 0
  %v414 = vsel %vm21, %v301, 0
  %v417 = vsel %vm21, %v306, 0
  %v420 = vsel %vm21, %v311, 0
  %422 = vmatprep.subr.mxu0 0.0
  %423 = vmatpush1.msra.mxu0 %v394
  %424 = vmatprep.subr.mxu0 0.0
  %425 = vmatpush1.msra.mxu0 %v395
  %426 = vmatprep.subr.mxu0 0.0
  %427 = vmatpush1.msra.mxu0 %v396
  %428 = vmatprep.subr.mxu0 0.0
  %429 = vmatpush1.msra.mxu0 %v397
  %430 = vmatprep.subr.mxu0 0.0
  %431 = vmatpush1.msra.mxu0 0.0
  %432 = vmatprep.subr.mxu0 0.0
  %433 = vmatpush1.msra.mxu0 0.0
  %434 = vmatprep.subr.mxu0 0.0
  %435 = vmatpush1.msra.mxu0 0.0
  %436 = vmatprep.subr.mxu0 0.0
  %437 = vmatpush1.msra.mxu0 0.0
  %438 = vmatprep.subr.mxu0 0.0
  %439 = vmatpush1.msra.mxu0 0.0
  %440 = vmatprep.subr.mxu0 0.0
  %441 = vmatpush1.msra.mxu0 0.0
  %442 = vmatprep.subr.mxu0 0.0
  %443 = vmatpush1.msra.mxu0 0.0
  %444 = vmatprep.subr.mxu0 0.0
  %445 = vmatpush1.msra.mxu0 0.0
  %446 = vmatprep.subr.mxu0 0.0
  %447 = vmatpush1.msra.mxu0 0.0
  %448 = vmatprep.subr.mxu0 0.0
  %449 = vmatpush1.msra.mxu0 0.0
  %450 = vmatprep.subr.mxu0 0.0
  %451 = vmatpush1.msra.mxu0 0.0
  %452 = vmatprep.subr.mxu0 0.0
  %453 = vmatpush1.msra.mxu0 0.0
  %454 = vmatprep.subr.mxu0 0.0
  %455 = vmatpush1.msra.mxu0 0.0
  %456 = vmatprep.subr.mxu0 0.0
  %457 = vmatpush1.msra.mxu0 0.0
  %458 = vmatprep.subr.mxu0 0.0
  %459 = vmatpush1.msra.mxu0 0.0
  %460 = vmatprep.subr.mxu0 0.0
  %461 = vmatpush1.msra.mxu0 0.0
  %462 = vmatprep.subr.mxu0 0.0
  %463 = vmatpush1.msra.mxu0 0.0
  %464 = vmatprep.subr.mxu0 0.0
  %465 = vmatpush1.msra.mxu0 0.0
  %466 = vmatprep.subr.mxu0 0.0
  %467 = vmatpush1.msra.mxu0 0.0
  %468 = vmatprep.subr.mxu0 0.0
  %469 = vmatpush1.msra.mxu0 0.0
  %470 = vmatprep.subr.mxu0 0.0
  %471 = vmatpush1.msra.mxu0 0.0
  %472 = vmatprep.subr.mxu0 0.0
  %473 = vmatpush1.msra.mxu0 0.0
  %474 = vmatprep.subr.mxu0 0.0
  %475 = vmatpush1.msra.mxu0 0.0
  %476 = vmatprep.subr.mxu0 0.0
  %477 = vmatpush1.msra.mxu0 0.0
  %478 = vmatprep.subr.mxu0 0.0
  %479 = vmatpush1.msra.mxu0 0.0
  %480 = vmatprep.subr.mxu0 0.0
  %481 = vmatpush1.msra.mxu0 0.0
  %482 = vmatprep.subr.mxu0 0.0
  %483 = vmatpush1.msra.mxu0 0.0
  %484 = vmatprep.subr.mxu0 0.0
  %485 = vmatpush1.msra.mxu0 0.0
  %486 = vmatprep.mubr.f32.mxu0 0.0
  %487 = vmatmul.mubr.f32.gmra.mrb[0].mxu0 %v399
  %v488 = vpop.f32.mrb[0].mxu0
  %v489 = vadd.f32 0.0, %v488
  %v490 = vpop.f32.mrb[0].mxu0
  %491 = vmatprep.mubr.f32.mxu0 0.0
  %492 = vmatmul.mubr.f32.gmra.mrb[0].mxu0 %v402
  %v493 = vpop.f32.mrb[0].mxu0
  %v494 = vadd.f32 0.0, %v493
  %v495 = vpop.f32.mrb[0].mxu0
  %496 = vmatprep.mubr.f32.mxu0 0.0
  %497 = vmatmul.mubr.f32.gmra.mrb[0].mxu0 %v405
  %v498 = vpop.f32.mrb[0].mxu0
  %v499 = vadd.f32 0.0, %v498
  %v500 = vpop.f32.mrb[0].mxu0
  %501 = vmatprep.mubr.f32.mxu0 0.0
  %502 = vmatmul.mubr.f32.gmra.mrb[0].mxu0 %v408
  %v503 = vpop.f32.mrb[0].mxu0
  %v504 = vadd.f32 0.0, %v503
  %v505 = vpop.f32.mrb[0].mxu0
  %506 = vmatprep.mubr.f32.mxu0 0.0
  %507 = vmatmul.mubr.f32.gmra.mrb[0].mxu0 %v411
  %v508 = vpop.f32.mrb[0].mxu0
  %v509 = vadd.f32 0.0, %v508
  %v510 = vpop.f32.mrb[0].mxu0
  %511 = vmatprep.mubr.f32.mxu0 0.0
  %512 = vmatmul.mubr.f32.gmra.mrb[0].mxu0 %v414
  %v513 = vpop.f32.mrb[0].mxu0
  %v514 = vadd.f32 0.0, %v513
  %v515 = vpop.f32.mrb[0].mxu0
  %516 = vmatprep.mubr.f32.mxu0 0.0
  %517 = vmatmul.mubr.f32.gmra.mrb[0].mxu0 %v417
  %v518 = vpop.f32.mrb[0].mxu0
  %v519 = vadd.f32 0.0, %v518
  %v520 = vpop.f32.mrb[0].mxu0
  %521 = vmatprep.mubr.f32.mxu0 0.0
  %522 = vmatmul.mubr.f32.gmra.mrb[0].mxu0 %v420
  %v523 = vpop.f32.mrb[0].mxu0
  %v524 = vadd.f32 0.0, %v523
  %v525 = vpop.f32.mrb[0].mxu0
  %526 = vdwg.mxu0
  %v527 = vadd.f32 %v236, %v489
  %v528 = vadd.f32 %v241, %v494
  %v529 = vadd.f32 %v246, %v499
  %v530 = vadd.f32 %v251, %v504
  %v531 = vadd.f32 %v256, %v509
  %v532 = vadd.f32 %v261, %v514
  %v533 = vadd.f32 %v266, %v519
  %v534 = vadd.f32 %v271, %v524
  %s535 = scalar_lea.vmem %s3, 32
  %v536 = vld [vmem:[%s535] sm:$0xff]
  %v537 = vld [vmem:[%s535 + $0x8] sm:$0xff]
  %v538 = vld [vmem:[%s535 + $0x10] sm:$0xff]
  %v539 = vld [vmem:[%s535 + $0x18] sm:$0xff]
  %v541 = vsel %vm21, %v316, 0
  %v544 = vsel %vm21, %v321, 0
  %v547 = vsel %vm21, %v326, 0
  %v550 = vsel %vm21, %v331, 0
  %v553 = vsel %vm21, %v336, 0
  %v556 = vsel %vm21, %v341, 0
  %v559 = vsel %vm21, %v346, 0
  %v562 = vsel %vm21, %v351, 0
  %564 = vmatprep.subr.mxu0 0.0
  %565 = vmatpush1.msra.mxu0 %v536
  %566 = vmatprep.subr.mxu0 0.0
  %567 = vmatpush1.msra.mxu0 %v537
  %568 = vmatprep.subr.mxu0 0.0
  %569 = vmatpush1.msra.mxu0 %v538
  %570 = vmatprep.subr.mxu0 0.0
  %571 = vmatpush1.msra.mxu0 %v539
  %572 = vmatprep.subr.mxu0 0.0
  %573 = vmatpush1.msra.mxu0 0.0
  %574 = vmatprep.subr.mxu0 0.0
  %575 = vmatpush1.msra.mxu0 0.0
  %576 = vmatprep.subr.mxu0 0.0
  %577 = vmatpush1.msra.mxu0 0.0
  %578 = vmatprep.subr.mxu0 0.0
  %579 = vmatpush1.msra.mxu0 0.0
  %580 = vmatprep.subr.mxu0 0.0
  %581 = vmatpush1.msra.mxu0 0.0
  %582 = vmatprep.subr.mxu0 0.0
  %583 = vmatpush1.msra.mxu0 0.0
  %584 = vmatprep.subr.mxu0 0.0
  %585 = vmatpush1.msra.mxu0 0.0
  %586 = vmatprep.subr.mxu0 0.0
  %587 = vmatpush1.msra.mxu0 0.0
  %588 = vmatprep.subr.mxu0 0.0
  %589 = vmatpush1.msra.mxu0 0.0
  %590 = vmatprep.subr.mxu0 0.0
  %591 = vmatpush1.msra.mxu0 0.0
  %592 = vmatprep.subr.mxu0 0.0
  %593 = vmatpush1.msra.mxu0 0.0
  %594 = vmatprep.subr.mxu0 0.0
  %595 = vmatpush1.msra.mxu0 0.0
  %596 = vmatprep.subr.mxu0 0.0
  %597 = vmatpush1.msra.mxu0 0.0
  %598 = vmatprep.subr.mxu0 0.0
  %599 = vmatpush1.msra.mxu0 0.0
  %600 = vmatprep.subr.mxu0 0.0
  %601 = vmatpush1.msra.mxu0 0.0
  %602 = vmatprep.subr.mxu0 0.0
  %603 = vmatpush1.msra.mxu0 0.0
  %604 = vmatprep.subr.mxu0 0.0
  %605 = vmatpush1.msra.mxu0 0.0
  %606 = vmatprep.subr.mxu0 0.0
  %607 = vmatpush1.msra.mxu0 0.0
  %608 = vmatprep.subr.mxu0 0.0
  %609 = vmatpush1.msra.mxu0 0.0
  %610 = vmatprep.subr.mxu0 0.0
  %611 = vmatpush1.msra.mxu0 0.0
  %612 = vmatprep.subr.mxu0 0.0
  %613 = vmatpush1.msra.mxu0 0.0
  %614 = vmatprep.subr.mxu0 0.0
  %615 = vmatpush1.msra.mxu0 0.0
  %616 = vmatprep.subr.mxu0 0.0
  %617 = vmatpush1.msra.mxu0 0.0
  %618 = vmatprep.subr.mxu0 0.0
  %619 = vmatpush1.msra.mxu0 0.0
  %620 = vmatprep.subr.mxu0 0.0
  %621 = vmatpush1.msra.mxu0 0.0
  %622 = vmatprep.subr.mxu0 0.0
  %623 = vmatpush1.msra.mxu0 0.0
  %624 = vmatprep.subr.mxu0 0.0
  %625 = vmatpush1.msra.mxu0 0.0
  %626 = vmatprep.subr.mxu0 0.0
  %627 = vmatpush1.msra.mxu0 0.0
  %628 = vmatprep.mubr.f32.mxu0 0.0
  %629 = vmatmul.mubr.f32.gmra.mrb[0].mxu0 %v541
  %v630 = vpop.f32.mrb[0].mxu0
  %v631 = vadd.f32 0.0, %v630
  %v632 = vpop.f32.mrb[0].mxu0
  %633 = vmatprep.mubr.f32.mxu0 0.0
  %634 = vmatmul.mubr.f32.gmra.mrb[0].mxu0 %v544
  %v635 = vpop.f32.mrb[0].mxu0
  %v636 = vadd.f32 0.0, %v635
  %v637 = vpop.f32.mrb[0].mxu0
  %638 = vmatprep.mubr.f32.mxu0 0.0
  %639 = vmatmul.mubr.f32.gmra.mrb[0].mxu0 %v547
  %v640 = vpop.f32.mrb[0].mxu0
  %v641 = vadd.f32 0.0, %v640
  %v642 = vpop.f32.mrb[0].mxu0
  %643 = vmatprep.mubr.f32.mxu0 0.0
  %644 = vmatmul.mubr.f32.gmra.mrb[0].mxu0 %v550
  %v645 = vpop.f32.mrb[0].mxu0
  %v646 = vadd.f32 0.0, %v645
  %v647 = vpop.f32.mrb[0].mxu0
  %648 = vmatprep.mubr.f32.mxu0 0.0
  %649 = vmatmul.mubr.f32.gmra.mrb[0].mxu0 %v553
  %v650 = vpop.f32.mrb[0].mxu0
  %v651 = vadd.f32 0.0, %v650
  %v652 = vpop.f32.mrb[0].mxu0
  %653 = vmatprep.mubr.f32.mxu0 0.0
  %654 = vmatmul.mubr.f32.gmra.mrb[0].mxu0 %v556
  %v655 = vpop.f32.mrb[0].mxu0
  %v656 = vadd.f32 0.0, %v655
  %v657 = vpop.f32.mrb[0].mxu0
  %658 = vmatprep.mubr.f32.mxu0 0.0
  %659 = vmatmul.mubr.f32.gmra.mrb[0].mxu0 %v559
  %v660 = vpop.f32.mrb[0].mxu0
  %v661 = vadd.f32 0.0, %v660
  %v662 = vpop.f32.mrb[0].mxu0
  %663 = vmatprep.mubr.f32.mxu0 0.0
  %664 = vmatmul.mubr.f32.gmra.mrb[0].mxu0 %v562
  %v665 = vpop.f32.mrb[0].mxu0
  %v666 = vadd.f32 0.0, %v665
  %v667 = vpop.f32.mrb[0].mxu0
  %668 = vdwg.mxu0
  %v669 = vadd.f32 %v527, %v631
  %v670 = vadd.f32 %v528, %v636
  %v671 = vadd.f32 %v529, %v641
  %v672 = vadd.f32 %v530, %v646
  %v673 = vadd.f32 %v531, %v651
  %v674 = vadd.f32 %v532, %v656
  %v675 = vadd.f32 %v533, %v661
  %v676 = vadd.f32 %v534, %v666
  %s677 = scalar_lea.vmem %s3, 64
  %v678 = vld [vmem:[%s677] sm:$0xff]
  %v679 = vld [vmem:[%s677 + $0x8] sm:$0xff]
  %v680 = vld [vmem:[%s677 + $0x10] sm:$0xff]
  %v681 = vld [vmem:[%s677 + $0x18] sm:$0xff]
  %v683 = vsel %vm21, %v356, 0
  %v686 = vsel %vm21, %v361, 0
  %v689 = vsel %vm21, %v366, 0
  %v692 = vsel %vm21, %v371, 0
  %v695 = vsel %vm21, %v376, 0
  %v698 = vsel %vm21, %v381, 0
  %v701 = vsel %vm21, %v386, 0
  %v704 = vsel %vm21, %v391, 0
  %706 = vmatprep.subr.mxu0 0.0
  %707 = vmatpush1.msra.mxu0 %v678
  %708 = vmatprep.subr.mxu0 0.0
  %709 = vmatpush1.msra.mxu0 %v679
  %710 = vmatprep.subr.mxu0 0.0
  %711 = vmatpush1.msra.mxu0 %v680
  %712 = vmatprep.subr.mxu0 0.0
  %713 = vmatpush1.msra.mxu0 %v681
  %714 = vmatprep.subr.mxu0 0.0
  %715 = vmatpush1.msra.mxu0 0.0
  %716 = vmatprep.subr.mxu0 0.0
  %717 = vmatpush1.msra.mxu0 0.0
  %718 = vmatprep.subr.mxu0 0.0
  %719 = vmatpush1.msra.mxu0 0.0
  %720 = vmatprep.subr.mxu0 0.0
  %721 = vmatpush1.msra.mxu0 0.0
  %722 = vmatprep.subr.mxu0 0.0
  %723 = vmatpush1.msra.mxu0 0.0
  %724 = vmatprep.subr.mxu0 0.0
  %725 = vmatpush1.msra.mxu0 0.0
  %726 = vmatprep.subr.mxu0 0.0
  %727 = vmatpush1.msra.mxu0 0.0
  %728 = vmatprep.subr.mxu0 0.0
  %729 = vmatpush1.msra.mxu0 0.0
  %730 = vmatprep.subr.mxu0 0.0
  %731 = vmatpush1.msra.mxu0 0.0
  %732 = vmatprep.subr.mxu0 0.0
  %733 = vmatpush1.msra.mxu0 0.0
  %734 = vmatprep.subr.mxu0 0.0
  %735 = vmatpush1.msra.mxu0 0.0
  %736 = vmatprep.subr.mxu0 0.0
  %737 = vmatpush1.msra.mxu0 0.0
  %738 = vmatprep.subr.mxu0 0.0
  %739 = vmatpush1.msra.mxu0 0.0
  %740 = vmatprep.subr.mxu0 0.0
  %741 = vmatpush1.msra.mxu0 0.0
  %742 = vmatprep.subr.mxu0 0.0
  %743 = vmatpush1.msra.mxu0 0.0
  %744 = vmatprep.subr.mxu0 0.0
  %745 = vmatpush1.msra.mxu0 0.0
  %746 = vmatprep.subr.mxu0 0.0
  %747 = vmatpush1.msra.mxu0 0.0
  %748 = vmatprep.subr.mxu0 0.0
  %749 = vmatpush1.msra.mxu0 0.0
  %750 = vmatprep.subr.mxu0 0.0
  %751 = vmatpush1.msra.mxu0 0.0
  %752 = vmatprep.subr.mxu0 0.0
  %753 = vmatpush1.msra.mxu0 0.0
  %754 = vmatprep.subr.mxu0 0.0
  %755 = vmatpush1.msra.mxu0 0.0
  %756 = vmatprep.subr.mxu0 0.0
  %757 = vmatpush1.msra.mxu0 0.0
  %758 = vmatprep.subr.mxu0 0.0
  %759 = vmatpush1.msra.mxu0 0.0
  %760 = vmatprep.subr.mxu0 0.0
  %761 = vmatpush1.msra.mxu0 0.0
  %762 = vmatprep.subr.mxu0 0.0
  %763 = vmatpush1.msra.mxu0 0.0
  %764 = vmatprep.subr.mxu0 0.0
  %765 = vmatpush1.msra.mxu0 0.0
  %766 = vmatprep.subr.mxu0 0.0
  %767 = vmatpush1.msra.mxu0 0.0
  %768 = vmatprep.subr.mxu0 0.0
  %769 = vmatpush1.msra.mxu0 0.0
  %770 = vmatprep.mubr.f32.mxu0 0.0
  %771 = vmatmul.mubr.f32.gmra.mrb[0].mxu0 %v683
  %v772 = vpop.f32.mrb[0].mxu0
  %v773 = vadd.f32 0.0, %v772
  %v774 = vpop.f32.mrb[0].mxu0
  %775 = vmatprep.mubr.f32.mxu0 0.0
  %776 = vmatmul.mubr.f32.gmra.mrb[0].mxu0 %v686
  %v777 = vpop.f32.mrb[0].mxu0
  %v778 = vadd.f32 0.0, %v777
  %v779 = vpop.f32.mrb[0].mxu0
  %780 = vmatprep.mubr.f32.mxu0 0.0
  %781 = vmatmul.mubr.f32.gmra.mrb[0].mxu0 %v689
  %v782 = vpop.f32.mrb[0].mxu0
  %v783 = vadd.f32 0.0, %v782
  %v784 = vpop.f32.mrb[0].mxu0
  %785 = vmatprep.mubr.f32.mxu0 0.0
  %786 = vmatmul.mubr.f32.gmra.mrb[0].mxu0 %v692
  %v787 = vpop.f32.mrb[0].mxu0
  %v788 = vadd.f32 0.0, %v787
  %v789 = vpop.f32.mrb[0].mxu0
  %790 = vmatprep.mubr.f32.mxu0 0.0
  %791 = vmatmul.mubr.f32.gmra.mrb[0].mxu0 %v695
  %v792 = vpop.f32.mrb[0].mxu0
  %v793 = vadd.f32 0.0, %v792
  %v794 = vpop.f32.mrb[0].mxu0
  %795 = vmatprep.mubr.f32.mxu0 0.0
  %796 = vmatmul.mubr.f32.gmra.mrb[0].mxu0 %v698
  %v797 = vpop.f32.mrb[0].mxu0
  %v798 = vadd.f32 0.0, %v797
  %v799 = vpop.f32.mrb[0].mxu0
  %800 = vmatprep.mubr.f32.mxu0 0.0
  %801 = vmatmul.mubr.f32.gmra.mrb[0].mxu0 %v701
  %v802 = vpop.f32.mrb[0].mxu0
  %v803 = vadd.f32 0.0, %v802
  %v804 = vpop.f32.mrb[0].mxu0
  %805 = vmatprep.mubr.f32.mxu0 0.0
  %806 = vmatmul.mubr.f32.gmra.mrb[0].mxu0 %v704
  %v807 = vpop.f32.mrb[0].mxu0
  %v808 = vadd.f32 0.0, %v807
  %v809 = vpop.f32.mrb[0].mxu0
  %810 = vdwg.mxu0
  %v811 = vadd.f32 %v669, %v773
  %v812 = vadd.f32 %v670, %v778
  %v813 = vadd.f32 %v671, %v783
  %v814 = vadd.f32 %v672, %v788
  %v815 = vadd.f32 %v673, %v793
  %v816 = vadd.f32 %v674, %v798
  %v817 = vadd.f32 %v675, %v803
  %v818 = vadd.f32 %v676, %v808
  %v819 = vxor.u32 %v811, 2147483648
  %v820 = vxor.u32 %v812, 2147483648
  %v821 = vxor.u32 %v813, 2147483648
  %v822 = vxor.u32 %v814, 2147483648
  %v823 = vmul.f32 %v819, 1.442695
  %v824 = vpow.pop %v823
  %v825 = vmul.f32 %v820, 1.442695
  %v826 = vpow.pop %v825
  %v827 = vmul.f32 %v821, 1.442695
  %v828 = vpow.pop %v827
  %v829 = vmul.f32 %v822, 1.442695
  %v830 = vpow.pop %v829
  %v831 = vadd.f32 %v824, 1.0
  %v832 = vadd.f32 %v826, 1.0
  %v833 = vadd.f32 %v828, 1.0
  %v834 = vadd.f32 %v830, 1.0
  %v835 = vrcp.pop %v831
  %v836 = vmul.f32 1.0, %v835
  %v837 = vrcp.pop %v832
  %v838 = vmul.f32 1.0, %v837
  %v839 = vrcp.pop %v833
  %v840 = vmul.f32 1.0, %v839
  %v841 = vrcp.pop %v834
  %v842 = vmul.f32 1.0, %v841
  %v843 = vtanh.pop %v815
  %v844 = vtanh.pop %v816
  %v845 = vtanh.pop %v817
  %v846 = vtanh.pop %v818
  %v847 = vld [vmem:[%s1] sm:$0xff]
  %v848 = vld [vmem:[%s1 + $0x8] sm:$0xff]
  %v849 = vld [vmem:[%s1 + $0x10] sm:$0xff]
  %v850 = vld [vmem:[%s1 + $0x18] sm:$0xff]
  %v851 = vmul.f32 %v836, %v847
  %v852 = vmul.f32 %v838, %v848
  %v853 = vmul.f32 %v840, %v849
  %v854 = vmul.f32 %v842, %v850
  %v855 = vsub.f32 1.0, %v836
  %v856 = vsub.f32 1.0, %v838
  %v857 = vsub.f32 1.0, %v840
  %v858 = vsub.f32 1.0, %v842
  %v859 = vmul.f32 %v855, %v843
  %v860 = vmul.f32 %v856, %v844
  %v861 = vmul.f32 %v857, %v845
  %v862 = vmul.f32 %v858, %v846
  %v863 = vadd.f32 %v851, %v859
  %v864 = vadd.f32 %v852, %v860
  %v865 = vadd.f32 %v853, %v861
  %v866 = vadd.f32 %v854, %v862
  %867 = vst.msk [vmem:[%s4] sm:$0xff] %vm21, %v863
  %868 = vst.msk [vmem:[%s4 + $0x8] sm:$0xff] %vm21, %v864
  %869 = vst.msk [vmem:[%s4 + $0x10] sm:$0xff] %vm21, %v865
  %870 = vst.msk [vmem:[%s4 + $0x18] sm:$0xff] %vm21, %v866
  // Predicated region
  $region18: #{cgrnn_cell_forward.1} parent=0 // pred_check
    _
  $region19: #{cgrnn_cell_forward.1} parent=0 // pred_check_branch
    %872 = sbr.rel (0) target = $region21
  $region20: #{cgrnn_cell_forward.1} parent=0 // pred_region
    _
  $region21: #{cgrnn_cell_forward.1} parent=0 // pred_fallthru
    _
  // Predicated region
  $region22: #{cgrnn_cell_forward.1} parent=0 // pred_check
    _
  $region23: #{cgrnn_cell_forward.1} parent=0 // pred_check_branch
    %874 = sbr.rel (0) target = $region25
  $region24: #{cgrnn_cell_forward.1} parent=0 // pred_region
    _
  $region25: #{cgrnn_cell_forward.1} parent=0 // pred_fallthru
    _

</llo_original>
